<compile_context>
chip_gen: v7x
topology: tpu7x:2x2x1
jax: 0.10.0
libtpu: 0.0.40
codegen_flags: <defaults>
</compile_context>

<pallas_src>
import numpy as np
import jax
import jax.numpy as jnp
from jax.experimental import pallas as pl
from jax.experimental.pallas import tpu as pltpu


# Sublane packing unit per itemsize (f32 vreg is [8,128], bf16 [16,128], int8 [32,128]).
_SUBLANE_UNIT = {4: 8, 2: 16, 1: 32}

# Below this many bytes, a standalone pallas_call (HBM round trip + launch) costs
# more than it saves; let XLA fuse the add instead.
_SMALL_BYPASS_BYTES = 256 * 1024


def make_positional_encoding(d_model: int, max_len: int = 100) -> jnp.ndarray:
    """Sinusoidal PE table matching the PyTorch __init__. Shape (max_len, d_model)."""
    pe = np.zeros((max_len, d_model), dtype=np.float32)
    position = np.arange(0, max_len, dtype=np.float32)[:, None]
    div_term = np.exp(
        np.arange(0, d_model, 2, dtype=np.float32) * (-np.log(10000.0) / d_model)
    )
    pe[:, 0::2] = np.sin(position * div_term)
    pe[:, 1::2] = np.cos(position * div_term[: d_model // 2])  # guard odd d_model
    return jnp.asarray(pe)


def _chip_params():
    """(per-block byte target, vmem_limit_bytes or None) based on the TPU generation."""
    try:
        kind = jax.devices()[0].device_kind.lower()
    except Exception:  # pragma: no cover - conservative fallback
        kind = ""
    if "7x" in kind or "v7" in kind:
        # v7x: 3.2 TB/s HBM makes the fixed per-step cost relatively heavier; use
        # ~8 MiB blocks and raise the scoped-VMEM limit (64 MiB physical per TC).
        return 8 * 1024 * 1024, 48 * 1024 * 1024
    if "v6" in kind:
        # v6e: 32 MiB default scoped VMEM; 2x(in)+2x(out)+2x(pe) of 4 MiB fits.
        return 4 * 1024 * 1024, None
    # v5e (16 MiB default scoped VMEM) and anything unknown: be conservative.
    # At 0.82 TB/s a 2 MiB block is still ~2.5us/step >> the 0.35us step overhead.
    return 2 * 1024 * 1024, None


def _round_down(v: int, unit: int) -> int:
    return max(unit, (v // unit) * unit)


def _pe_add_kernel(x_ref, pe_ref, o_ref):
    # Seq-tiled path:   x/o (bt, ts, D), pe (ts, D)  -> broadcast over leading dim.
    # Lane-folded path: x/o (bt, S*D),   pe (1, S*D) -> sublane broadcast.
    o_ref[...] = x_ref[...] + pe_ref[...]


def _cost(B, S, D, itemsize):
    return pl.CostEstimate(
        flops=B * S * D,
        transcendentals=0,
        bytes_accessed=(2 * B * S * D + S * D) * itemsize,
    )


def _compiler_params(vmem_limit):
    kwargs = dict(dimension_semantics=("parallel", "parallel"))
    if vmem_limit is not None:
        kwargs["vmem_limit_bytes"] = vmem_limit
    return pltpu.CompilerParams(**kwargs)


def _forward_seq_tiled(x, pe_slice, target_bytes, vmem_limit):
    """D is a multiple of 128: keep (B, S, D); blocks are (bt, ts, D) with the batch
    dimension folded into the block so each grid step moves ~target_bytes."""
    B, S, D = x.shape
    itemsize = jnp.dtype(x.dtype).itemsize
    sub = _SUBLANE_UNIT.get(itemsize, 8)

    row_bytes = D * itemsize
    # Seq tile: whole S if it fits the budget, else a sublane-aligned chunk.
    budget_rows = max(1, target_bytes // row_bytes)
    ts = S if S <= budget_rows else min(S, _round_down(budget_rows, sub))
    # Batch tile: fill the remaining budget with whole (ts, D) slabs.
    slab_bytes = ts * row_bytes
    bt = max(1, min(B, target_bytes // slab_bytes))

    n_b, n_s = pl.cdiv(B, bt), pl.cdiv(S, ts)
    # v7x megacore: if the whole tensor fit in one block but is non-trivial, split
    # the batch axis in two so both TensorCores drive their own DMA streams.
    if n_b == 1 and n_s == 1 and B >= 2 and B * S * D * itemsize >= (1 << 20):
        bt = (B + 1) // 2
        n_b = pl.cdiv(B, bt)

    return pl.pallas_call(
        _pe_add_kernel,
        out_shape=jax.ShapeDtypeStruct((B, S, D), x.dtype),
        grid=(n_b, n_s),
        in_specs=[
            pl.BlockSpec((bt, ts, D), lambda bi, si: (bi, si, 0)),
            pl.BlockSpec((ts, D), lambda bi, si: (si, 0)),  # PE, batch-invariant
        ],
        out_specs=pl.BlockSpec((bt, ts, D), lambda bi, si: (bi, si, 0)),
        compiler_params=_compiler_params(vmem_limit),
        cost_estimate=_cost(B, S, D, itemsize),
    )(x, pe_slice)


def _forward_lane_folded(x, pe_slice, target_bytes, vmem_limit):
    """D not a multiple of 128 (e.g. the demo's D=32): fold (S, D) into the lane axis
    so stores are lane-dense, and tile over batch rows / lane chunks."""
    B, S, D = x.shape
    N = S * D
    itemsize = jnp.dtype(x.dtype).itemsize
    sub = _SUBLANE_UNIT.get(itemsize, 8)

    x2 = x.reshape(B, N)
    pe2 = pe_slice.reshape(1, N)

    row_bytes = N * itemsize
    if row_bytes <= target_bytes:
        tl = N  # full lane slab
        budget_rows = max(1, target_bytes // row_bytes)
        bt = B if budget_rows >= B else min(B, _round_down(budget_rows, sub))
    else:
        bt = min(B, sub)
        lane_budget = max(128, target_bytes // (bt * itemsize))
        tl = min(N, _round_down(lane_budget, 128))

    grid = (pl.cdiv(B, bt), pl.cdiv(N, tl))

    out2 = pl.pallas_call(
        _pe_add_kernel,
        out_shape=jax.ShapeDtypeStruct((B, N), x.dtype),
        grid=grid,
        in_specs=[
            pl.BlockSpec((bt, tl), lambda bi, li: (bi, li)),
            pl.BlockSpec((1, tl), lambda bi, li: (0, li)),  # PE row, batch-invariant
        ],
        out_specs=pl.BlockSpec((bt, tl), lambda bi, li: (bi, li)),
        compiler_params=_compiler_params(vmem_limit),
        cost_estimate=_cost(B, S, D, itemsize),
    )(x2, pe2)
    return out2.reshape(B, S, D)


def positional_encoding_forward(
    x: jnp.ndarray,
    pe: jnp.ndarray,
    *,
    min_pallas_bytes: int = _SMALL_BYPASS_BYTES,
) -> jnp.ndarray:
    """x: (B, S, D). pe: (max_len, D). Returns x + pe[:S] broadcast over batch."""
    B, S, D = x.shape
    pe_slice = pe[:S, :].astype(x.dtype)  # static slice + dtype match (bf16-friendly)

    # Tiny tensors: a standalone pallas_call is pure overhead — let XLA fuse the add.
    if B * S * D * jnp.dtype(x.dtype).itemsize < min_pallas_bytes:
        return x + pe_slice[None]

    target_bytes, vmem_limit = _chip_params()
    if D % 128 == 0:
        return _forward_seq_tiled(x, pe_slice, target_bytes, vmem_limit)
    return _forward_lane_folded(x, pe_slice, target_bytes, vmem_limit)


if __name__ == "__main__":
    key = jax.random.PRNGKey(0)
    max_len = 100

    # --- Demo shape from the module convention: (batch=2, seq=8, d_model=32) ---
    B, S, D = 2, 8, 32
    x = jax.random.normal(key, (B, S, D), dtype=jnp.float32)
    pe = make_positional_encoding(D, max_len=max_len)
    ref = x + pe[None, :S, :]

    # Default dispatch: tiny tensor -> fused plain-JAX add path.
    out = jax.block_until_ready(positional_encoding_forward(x, pe))
    np.testing.assert_allclose(np.asarray(out), np.asarray(ref), rtol=1e-6, atol=1e-6)

    # Force the Pallas lane-folded kernel at the same small shape.
    out_k = jax.block_until_ready(
        positional_encoding_forward(x, pe, min_pallas_bytes=0)
    )
    np.testing.assert_allclose(np.asarray(out_k), np.asarray(ref), rtol=1e-6, atol=1e-6)

    # --- Exercise the batch-folded, lane-dense seq-tiled Pallas path (D % 128 == 0) ---
    B2, S2, D2 = 4, 24, 128
    x2 = jax.random.normal(jax.random.PRNGKey(0), (B2, S2, D2), dtype=jnp.float32)
    pe2 = make_positional_encoding(D2, max_len=max_len)
    ref2 = x2 + pe2[None, :S2, :]
    out2 = jax.block_until_ready(
        positional_encoding_forward(x2, pe2, min_pallas_bytes=0)
    )
    np.testing.assert_allclose(np.asarray(out2), np.asarray(ref2), rtol=1e-6, atol=1e-6)

    print("KERNEL_OK")
</pallas_src>

<mosaic_0001>
module attributes {stable_mosaic.version = 11 : i64} {
  func.func @_pe_add_kernel(%arg0: i32, %arg1: i32, %arg2: memref<2x256xf32, #tpu.memory_space<vmem>>, %arg3: memref<1x256xf32, #tpu.memory_space<vmem>>, %arg4: memref<2x256xf32, #tpu.memory_space<vmem>>) attributes {dimension_semantics = [#tpu.dimension_semantics<parallel>, #tpu.dimension_semantics<parallel>], iteration_bounds = array<i64: 1, 1>, scalar_prefetch = 0 : i64, scratch_operands = 0 : i64, tpu.core_type = #tpu.core_type<tc>, window_params = [{transform_indices = @transform_0, window_bounds = array<i64: 2, 256>}, {transform_indices = @transform_1, window_bounds = array<i64: 1, 256>}, {transform_indices = @transform_2, window_bounds = array<i64: 2, 256>}]} {
    %c0 = arith.constant 0 : index
    %c0_0 = arith.constant 0 : index
    %0 = vector.load %arg2[%c0, %c0_0] : memref<2x256xf32, #tpu.memory_space<vmem>>, vector<2x256xf32>
    %c0_1 = arith.constant 0 : index
    %c0_2 = arith.constant 0 : index
    %1 = vector.load %arg3[%c0_1, %c0_2] : memref<1x256xf32, #tpu.memory_space<vmem>>, vector<1x256xf32>
    %2 = vector.broadcast %1 : vector<1x256xf32> to vector<2x256xf32>
    %3 = arith.addf %0, %2 : vector<2x256xf32>
    %c0_3 = arith.constant 0 : index
    %c0_4 = arith.constant 0 : index
    %4 = vector.load %arg4[%c0_3, %c0_4] : memref<2x256xf32, #tpu.memory_space<vmem>>, vector<2x256xf32>
    tpu.vector_store %arg4[%c0_3, %c0_4], %3 {strides = array<i32>} : memref<2x256xf32, #tpu.memory_space<vmem>>, vector<2x256xf32>,
    return
  }
  func.func @transform_0(%arg0: i32, %arg1: i32) -> (i32, i32) {
    %c0_i32 = arith.constant 0 : i32
    return %arg0, %arg1 : i32, i32
  }
  func.func @transform_1(%arg0: i32, %arg1: i32) -> (i32, i32) {
    %c0_i32 = arith.constant 0 : i32
    %c0_i32_0 = arith.constant 0 : i32
    return %c0_i32, %arg1 : i32, i32
  }
  func.func @transform_2(%arg0: i32, %arg1: i32) -> (i32, i32) {
    %c0_i32 = arith.constant 0 : i32
    return %arg0, %arg1 : i32, i32
  }
}

</mosaic_0001>

<llo_original>
// kernel: tpu_custom_call.1
$region0: #{tpu_custom_call.1}
  #allocation0 [shape = 'u32[]', space=smem, size = 0x4, offset = 0x4, fixed_abs, tag = 'smem constant byte address 0x4 - core index']
  #allocation1 [shape = 'u32[144,128]{1,0:T(1,128)}', space=vmem, size = 0x12000, scoped, tag = 'internal scratch']
  %s0 = inlined_call_operand.hbm [shape: f32[2,256], index: 0, kind: input, shape index: {}]
  %s1 = inlined_call_operand.vmem [shape: f32[1,256], index: 1, kind: input, shape index: {}]
  %s2 = inlined_call_operand.hbm [shape: f32[2,256], index: 2, kind: output, shape index: {}]
  %s3 = sld [smem:[#allocation0]]
  $region22: #{tpu_custom_call.1} parent=0
    _
  %s5 = ssub.s32 1, %s3
  %s6 = scalar_select 0, %s5, %s3
  $region1: #{tpu_custom_call.1} parent=0
    #allocation2 [shape = 'u8[2048]{0}', space=vmem, size = 0x800, scoped, tag = 'input window, operand 0, single buffered']
    #allocation3 [shape = 's32[1]{0}', space=sflag, size = 0x4, scoped, tag = 'scoped memory for tpu_custom_call.1']
    #allocation4 [shape = 's32[1]{0}', space=sflag, size = 0x4, scoped, tag = 'scoped memory for tpu_custom_call.1']
    #allocation5 [shape = 'u8[2048]{0}', space=vmem, size = 0x800, scoped, tag = 'output window, operand 0, single buffered']
    %7 = vsyncpa [#allocation3], 0
    %8 = vsyncpa [#allocation4], 0
    // Predicated region
    $region2: #{tpu_custom_call.1} parent=1 // pred_check
      _
    $region3: #{tpu_custom_call.1} parent=1 // pred_check_branch
      %10 = sbr.rel (0) target = $region5
    $region4: #{tpu_custom_call.1} parent=1 // pred_region
      %s12 = ssub.s32 64, 64
      %13 = vsyncadd [#allocation3], %s12
      %s15 = sshll.u32 [#allocation2], 4
      %s16 = int_to_ptr.vmem [resolvable:$true] %s15
      %18 = dma.hbm_to_vmem [thread:$0]  %s0, 64, %s16, [#allocation3]
    $region5: #{tpu_custom_call.1} parent=1 // pred_fallthru
      _
    // Predicated region
    $region6: #{tpu_custom_call.1} parent=1 // pred_check
      _
    $region7: #{tpu_custom_call.1} parent=1 // pred_check_branch
      %20 = sbr.rel (0) target = $region9
    $region8: #{tpu_custom_call.1} parent=1 // pred_region
      _
    $region9: #{tpu_custom_call.1} parent=1 // pred_fallthru
      _
    // Predicated region
    $region10: #{tpu_custom_call.1} parent=1 // pred_check
      _
    $region11: #{tpu_custom_call.1} parent=1 // pred_check_branch
      %22 = sbr.rel (0) target = $region13
    $region12: #{tpu_custom_call.1} parent=1 // pred_region
      %23 = dma.done [#allocation3], 64
    $region13: #{tpu_custom_call.1} parent=1 // pred_fallthru
      _
    %v24 = vld [vmem:[#allocation2] sm:$0xf]
    %v25 = vld [vmem:[%s1] sm:$0x3]
    %v27 = vlaneseq
    %v28 = vshrl.u32 %v27, 7
    %v29 = vsub.s32 0, %v28
    %v30 = vrot.slane %v25, %v29
    %v31 = vlaneseq
    %v32 = vshrl.u32 %v31, 7
    %v33 = vsub.s32 1, %v32
    %v34 = vrot.slane %v25, %v33
    %v35 = vcombine.low %v30, %v34
    %v37 = vunpack.c.l.s4 1983009808
    %v38 = vunpack.c.0.s8 %v37
    %v39 = vlaneseq
    %v40 = vshrl.u32 %v39, 7
    %v41 = vsub.s32 %v38, %v40
    %v42 = vrot.slane %v35, %v41
    %v44 = vadd.f32 %v24, %v42
    %45 = vst [vmem:[#allocation5] sm:$0xf] %v44
    // Predicated region
    $region14: #{tpu_custom_call.1} parent=1 // pred_check
      _
    $region15: #{tpu_custom_call.1} parent=1 // pred_check_branch
      %47 = sbr.rel (0) target = $region17
    $region16: #{tpu_custom_call.1} parent=1 // pred_region
      %s49 = ssub.s32 64, 64
      %50 = vsyncadd [#allocation4], %s49
      %s52 = sshll.u32 [#allocation5], 4
      %s53 = int_to_ptr.vmem [resolvable:$true] %s52
      %55 = dma.vmem_to_hbm [thread:$0]  %s53, 64, %s2, [#allocation4]
    $region17: #{tpu_custom_call.1} parent=1 // pred_fallthru
      _
    // Predicated region
    $region18: #{tpu_custom_call.1} parent=1 // pred_check
      _
    $region19: #{tpu_custom_call.1} parent=1 // pred_check_branch
      %57 = sbr.rel (0) target = $region21
    $region20: #{tpu_custom_call.1} parent=1 // pred_region
      %58 = dma.done [#allocation4], 64
    $region21: #{tpu_custom_call.1} parent=1 // pred_fallthru
      _
    %59 = vsyncpa [#allocation3], 1
    %60 = vsyncpa [#allocation4], 1

</llo_original>
